<compile_context>
chip_gen: v7x
topology: tpu7x:2x2x1
jax: 0.10.0
libtpu: 0.0.40
codegen_flags: <defaults>
</compile_context>

<pallas_src>
import jax
import jax.numpy as jnp
from jax import lax
from jax.experimental import pallas as pl
from jax.experimental.pallas import tpu as pltpu

SCALE_FACTOR = 10.0
EPS = 1e-5                 # matches torch: x/(||x||+1e-5), W/(||W||+1e-5)
MIN_PALLAS_BATCH = 256     # below this, fall back to fused XLA (overhead-bound)


def distlinear_kernel(x_ref, w_ref, inv_w_ref, out_ref):
    # x_ref: (bB, F) bf16   w_ref: (Cp, F) bf16   inv_w_ref: (1, Cp) f32
    # out_ref: (bB, Cp)
    x = x_ref[...]                       # bf16, straight to the MXU
    w = w_ref[...]                       # bf16

    # Raw scores: contract last dim of both operands (no transpose), f32 acc.
    s = lax.dot_general(
        x, w,
        dimension_numbers=(((1,), (1,)), ((), ())),
        preferred_element_type=jnp.float32,
    )                                                            # (bB, Cp) f32

    # Row-wise 1/(||x|| + eps) in f32 (v5e has no bf16 VPU/EUP); the
    # approximate reciprocal runs on the EUP (its own bundle slot).
    xf = x.astype(jnp.float32)
    x_norm = jnp.sqrt(jnp.sum(xf * xf, axis=1, keepdims=True))   # (bB, 1)
    inv_x = pl.reciprocal(x_norm + EPS, approx=True)

    # Rank-1 scaling; SCALE_FACTOR already folded into inv_w_ref.
    out_ref[...] = (s * inv_x * inv_w_ref[...]).astype(out_ref.dtype)


def prepare_classifier(weight):
    """Hoisted per-classifier precompute (reused across forward calls).

    Pads classes up to a multiple of 128 (lane-dense output).  Returns the
    padded weight in bf16 (MXU-native) and scale/(||w_row|| + eps) as a
    (1, Cp) f32 row, with the padded entries set to 0 so padded columns of the
    output are exactly zero regardless of what the padded weight rows hold.
    """
    C, F = weight.shape
    C_pad = ((C + 127) // 128) * 128
    w_pad = jnp.zeros((C_pad, F), jnp.float32).at[:C, :].set(
        weight.astype(jnp.float32))
    w_norm = jnp.sqrt(jnp.sum(w_pad * w_pad, axis=1, keepdims=True))  # (Cp,1)
    inv_w = (SCALE_FACTOR / (w_norm + EPS)).reshape(1, C_pad)
    valid = (jnp.arange(C_pad) < C).reshape(1, C_pad)
    inv_w = jnp.where(valid, inv_w, 0.0).astype(jnp.float32)
    return w_pad.astype(jnp.bfloat16), inv_w


def dist_linear(x, w_pad, inv_w, num_classes, *, force_pallas=False,
                out_dtype=jnp.float32):
    B, F = x.shape
    C_pad, F2 = w_pad.shape
    assert F == F2 and inv_w.shape == (1, C_pad)

    if B < MIN_PALLAS_BATCH and not force_pallas:
        # Tiny batch: fixed pallas_call overhead dominates -> fused XLA path.
        xf = x.astype(jnp.float32)
        inv_x = 1.0 / (jnp.sqrt(jnp.sum(xf * xf, axis=1, keepdims=True)) + EPS)
        s = jnp.dot(xf, w_pad.astype(jnp.float32).T,
                    preferred_element_type=jnp.float32)
        return (s * inv_x * inv_w)[:, :num_classes].astype(out_dtype)

    x = x.astype(jnp.bfloat16)   # halve streamed bytes; MXU-native dtype

    # 512-row tiles (>=85% of HBM roofline on v6e for mem-bound streaming),
    # 16-row aligned for bf16 sublane packing.  B > 512 -> >=2 grid steps so
    # the "parallel" axis can shard across v7x's two TensorCores.  The edge
    # block (B not a multiple of block_b) is handled by Pallas masked DMA.
    block_b = min(512, ((B + 15) // 16) * 16)
    grid = (pl.cdiv(B, block_b),)

    cost = pl.CostEstimate(
        flops=2 * B * C_pad * F + 3 * B * F + 2 * B * C_pad,
        transcendentals=2 * B,
        bytes_accessed=2 * B * F + 2 * C_pad * F + 4 * C_pad + 4 * B * C_pad,
    )

    out = pl.pallas_call(
        distlinear_kernel,
        out_shape=jax.ShapeDtypeStruct((B, C_pad), out_dtype),
        grid=grid,
        in_specs=[
            pl.BlockSpec((block_b, F), lambda i: (i, 0)),   # x tile (streamed)
            pl.BlockSpec((C_pad, F), lambda i: (0, 0)),     # W resident
            pl.BlockSpec((1, C_pad), lambda i: (0, 0)),     # scale/||w|| resident
        ],
        out_specs=pl.BlockSpec((block_b, C_pad), lambda i: (i, 0)),
        compiler_params=pltpu.CompilerParams(
            dimension_semantics=("parallel",)),
        cost_estimate=cost,
    )(x, w_pad, inv_w)

    return out[:, :num_classes]


def backbone(data):
    # Identity backbone: `data` is already a (B, 160) feature tensor.
    return data


def model_forward(data, w_pad, inv_w, num_classes, **kw):
    feats = backbone(data)
    return dist_linear(feats, w_pad, inv_w, num_classes, **kw)


if __name__ == "__main__":
    key = jax.random.PRNGKey(0)
    k_x, k_w, k_x2 = jax.random.split(key, 3)

    feat_dim = 160       # distLinear(160, num_classes)
    num_classes = 16

    # deterministic init for nn.Linear(160, num_classes, bias=False).weight
    w = jax.random.normal(k_w, (num_classes, feat_dim), jnp.float32) * 0.05
    w_pad, inv_w = prepare_classifier(w)   # hoisted, reused across calls

    def reference(xx):
        x_n = xx / (jnp.linalg.norm(xx, axis=1, keepdims=True) + EPS)
        w_n = w / (jnp.linalg.norm(w, axis=1, keepdims=True) + EPS)
        return SCALE_FACTOR * (x_n @ w_n.T)

    # --- small batch, forced Pallas path (single partial block) ---
    batch = 8
    x = jax.random.normal(k_x, (batch, feat_dim), jnp.float32)
    scores = model_forward(x, w_pad, inv_w, num_classes, force_pallas=True)
    jax.block_until_ready(scores)
    assert scores.shape == (batch, num_classes)
    # bf16 MXU operands + approximate (EUP) reciprocal -> relaxed tolerance.
    assert jnp.allclose(scores, reference(x), atol=7.5e-2, rtol=2e-2), \
        "small-batch mismatch vs reference"

    # --- larger batch: multi-step grid + masked edge block (520 = 512 + 8) ---
    batch2 = 520
    x2 = jax.random.normal(k_x2, (batch2, feat_dim), jnp.float32)
    scores2 = model_forward(x2, w_pad, inv_w, num_classes)
    jax.block_until_ready(scores2)
    assert scores2.shape == (batch2, num_classes)
    assert jnp.allclose(scores2, reference(x2), atol=7.5e-2, rtol=2e-2), \
        "large-batch mismatch vs reference"

    # --- size-gated fallback (tiny batch, no force) stays correct too ---
    small = dist_linear(x, w_pad, inv_w, num_classes)
    assert jnp.allclose(small, reference(x), atol=7.5e-2, rtol=2e-2), \
        "fallback path mismatch vs reference"

    print("KERNEL_OK")
</pallas_src>

<mosaic_0001>
module attributes {stable_mosaic.version = 11 : i64} {
  func.func @distlinear_kernel(%arg0: i32, %arg1: memref<16x160xbf16, #tpu.memory_space<vmem>>, %arg2: memref<128x160xbf16, #tpu.memory_space<vmem>>, %arg3: memref<1x128xf32, #tpu.memory_space<vmem>>, %arg4: memref<16x128xf32, #tpu.memory_space<vmem>>) attributes {dimension_semantics = [#tpu.dimension_semantics<parallel>], iteration_bounds = array<i64: 1>, scalar_prefetch = 0 : i64, scratch_operands = 0 : i64, tpu.core_type = #tpu.core_type<tc>, window_params = [{transform_indices = @transform_0, window_bounds = array<i64: 16, 160>}, {pipeline_mode = #tpu.pipeline_mode<synchronous>, transform_indices = @transform_1, window_bounds = array<i64: 128, 160>}, {pipeline_mode = #tpu.pipeline_mode<synchronous>, transform_indices = @transform_2, window_bounds = array<i64: 1, 128>}, {transform_indices = @transform_3, window_bounds = array<i64: 16, 128>}]} {
    %c0 = arith.constant 0 : index
    %c0_0 = arith.constant 0 : index
    %0 = vector.load %arg1[%c0, %c0_0] : memref<16x160xbf16, #tpu.memory_space<vmem>>, vector<16x160xbf16>
    %c0_1 = arith.constant 0 : index
    %c0_2 = arith.constant 0 : index
    %1 = vector.load %arg2[%c0_1, %c0_2] : memref<128x160xbf16, #tpu.memory_space<vmem>>, vector<128x160xbf16>
    %cst = arith.constant dense<0.000000e+00> : vector<16x128xf32>
    %2 = tpu.matmul %0, %1, %cst {dimension_numbers = #tpu.dot_dimension_numbers<[1], [1], [0], [0], [0, 0, 1, 0], [], []>} : vector<16x160xbf16>, vector<128x160xbf16>, vector<16x128xf32> -> vector<16x128xf32>
    %3 = arith.extf %0 : vector<16x160xbf16> to vector<16x160xf32>
    %4 = arith.mulf %3, %3 : vector<16x160xf32>
    %cst_3 = arith.constant dense<0.000000e+00> : vector<16xf32>
    %5 = vector.multi_reduction <add>, %4, %cst_3 [1] : vector<16x160xf32> to vector<16xf32>
    %6 = vector.shape_cast %5 : vector<16xf32> to vector<16x1xf32>
    %7 = math.sqrt %6 : vector<16x1xf32>
    %cst_4 = arith.constant 9.99999974E-6 : f32
    %8 = vector.broadcast %cst_4 : f32 to vector<16x1xf32>
    %9 = arith.addf %7, %8 : vector<16x1xf32>
    %10 = tpu.reciprocal %9 {approx = true} : vector<16x1xf32> -> vector<16x1xf32>
    %11 = vector.broadcast %10 : vector<16x1xf32> to vector<16x128xf32>
    %12 = arith.mulf %2, %11 : vector<16x128xf32>
    %c0_5 = arith.constant 0 : index
    %c0_6 = arith.constant 0 : index
    %13 = vector.load %arg3[%c0_5, %c0_6] : memref<1x128xf32, #tpu.memory_space<vmem>>, vector<1x128xf32>
    %14 = vector.broadcast %13 : vector<1x128xf32> to vector<16x128xf32>
    %15 = arith.mulf %12, %14 : vector<16x128xf32>
    %c0_7 = arith.constant 0 : index
    %c0_8 = arith.constant 0 : index
    %16 = vector.load %arg4[%c0_7, %c0_8] : memref<16x128xf32, #tpu.memory_space<vmem>>, vector<16x128xf32>
    tpu.vector_store %arg4[%c0_7, %c0_8], %15 {strides = array<i32>} : memref<16x128xf32, #tpu.memory_space<vmem>>, vector<16x128xf32>,
    return
  }
  func.func @transform_0(%arg0: i32) -> (i32, i32) {
    %c0_i32 = arith.constant 0 : i32
    %c0_i32_0 = arith.constant 0 : i32
    return %arg0, %c0_i32 : i32, i32
  }
  func.func @transform_1(%arg0: i32) -> (i32, i32) {
    %c0_i32 = arith.constant 0 : i32
    %c0_i32_0 = arith.constant 0 : i32
    %c0_i32_1 = arith.constant 0 : i32
    return %c0_i32, %c0_i32_0 : i32, i32
  }
  func.func @transform_2(%arg0: i32) -> (i32, i32) {
    %c0_i32 = arith.constant 0 : i32
    %c0_i32_0 = arith.constant 0 : i32
    %c0_i32_1 = arith.constant 0 : i32
    return %c0_i32, %c0_i32_0 : i32, i32
  }
  func.func @transform_3(%arg0: i32) -> (i32, i32) {
    %c0_i32 = arith.constant 0 : i32
    %c0_i32_0 = arith.constant 0 : i32
    return %arg0, %c0_i32 : i32, i32
  }
}

</mosaic_0001>

<llo_original>
// kernel: tpu_custom_call.1
$region0: #{tpu_custom_call.1}
  #allocation0 [shape = 'u32[]', space=smem, size = 0x4, offset = 0x4, fixed_abs, tag = 'smem constant byte address 0x4 - core index']
  #allocation1 [shape = 'u32[144,128]{1,0:T(1,128)}', space=vmem, size = 0x12000, scoped, tag = 'internal scratch']
  %s0 = inlined_call_operand.vmem [shape: bf16[8,160], index: 0, kind: input, shape index: {}]
  %s1 = inlined_call_operand.vmem [shape: bf16[128,160], index: 1, kind: input, shape index: {}]
  %s2 = inlined_call_operand.vmem [shape: f32[1,128], index: 2, kind: input, shape index: {}]
  %s3 = inlined_call_operand.hbm [shape: f32[8,128], index: 3, kind: output, shape index: {}]
  %s4 = sld [smem:[#allocation0]]
  $region22: #{tpu_custom_call.1} parent=0
    _
  %s6 = ssub.s32 1, %s4
  %s7 = scalar_select 0, %s6, %s4
  $region1: #{tpu_custom_call.1} parent=0
    #allocation2 [shape = 'u8[8192]{0}', space=vmem, size = 0x2000, scoped, tag = 'output window, operand 0, single buffered']
    #allocation3 [shape = 's32[1]{0}', space=sflag, size = 0x4, scoped, tag = 'scoped memory for tpu_custom_call.1']
    %8 = vsyncpa [#allocation3], 0
    // Predicated region
    $region2: #{tpu_custom_call.1} parent=1 // pred_check
      _
    $region3: #{tpu_custom_call.1} parent=1 // pred_check_branch
      %10 = sbr.rel (0) target = $region5
    $region4: #{tpu_custom_call.1} parent=1 // pred_region
      _
    $region5: #{tpu_custom_call.1} parent=1 // pred_fallthru
      _
    // Predicated region
    $region6: #{tpu_custom_call.1} parent=1 // pred_check
      _
    $region7: #{tpu_custom_call.1} parent=1 // pred_check_branch
      %12 = sbr.rel (0) target = $region9
    $region8: #{tpu_custom_call.1} parent=1 // pred_region
      _
    $region9: #{tpu_custom_call.1} parent=1 // pred_fallthru
      _
    // Predicated region
    $region10: #{tpu_custom_call.1} parent=1 // pred_check
      _
    $region11: #{tpu_custom_call.1} parent=1 // pred_check_branch
      %14 = sbr.rel (0) target = $region13
    $region12: #{tpu_custom_call.1} parent=1 // pred_region
      _
    $region13: #{tpu_custom_call.1} parent=1 // pred_fallthru
      _
    %v16 = vld [vmem:[%s0] sm:$0xff]
    %v17 = vld [vmem:[%s0 + $0x8] sm:$0xff]
    %v18 = vld [vmem:[%s1] sm:$0xff]
    %v19 = vld [vmem:[%s1 + $0x8] sm:$0xff]
    %v20 = vld [vmem:[%s1 + $0x10] sm:$0xff]
    %v21 = vld [vmem:[%s1 + $0x18] sm:$0xff]
    %v22 = vld [vmem:[%s1 + $0x20] sm:$0xff]
    %v23 = vld [vmem:[%s1 + $0x28] sm:$0xff]
    %v24 = vld [vmem:[%s1 + $0x30] sm:$0xff]
    %v25 = vld [vmem:[%s1 + $0x38] sm:$0xff]
    %v26 = vld [vmem:[%s1 + $0x40] sm:$0xff]
    %v27 = vld [vmem:[%s1 + $0x48] sm:$0xff]
    %v28 = vld [vmem:[%s1 + $0x50] sm:$0xff]
    %v29 = vld [vmem:[%s1 + $0x58] sm:$0xff]
    %v30 = vld [vmem:[%s1 + $0x60] sm:$0xff]
    %v31 = vld [vmem:[%s1 + $0x68] sm:$0xff]
    %v32 = vld [vmem:[%s1 + $0x70] sm:$0xff]
    %v33 = vld [vmem:[%s1 + $0x78] sm:$0xff]
    %v36 = vunpack.c.l.b16 %v16
    %v37 = vunpack.c.h.b16 %v16
    %v38 = vunpack.c.l.b16 %v17
    %v39 = vunpack.c.h.b16 %v17
    %v40 = vpack.c.b16 %v38, %v36
    %v41 = vpack.c.b16 %v39, %v37
    %v59 = vunpack.c.l.b16 %v18
    %v60 = vunpack.c.h.b16 %v18
    %v61 = vunpack.c.l.b16 %v19
    %v62 = vunpack.c.h.b16 %v19
    %v63 = vunpack.c.l.b16 %v20
    %v64 = vunpack.c.h.b16 %v20
    %v65 = vunpack.c.l.b16 %v21
    %v66 = vunpack.c.h.b16 %v21
    %v67 = vunpack.c.l.b16 %v22
    %v68 = vunpack.c.h.b16 %v22
    %v69 = vunpack.c.l.b16 %v23
    %v70 = vunpack.c.h.b16 %v23
    %v71 = vunpack.c.l.b16 %v24
    %v72 = vunpack.c.h.b16 %v24
    %v73 = vunpack.c.l.b16 %v25
    %v74 = vunpack.c.h.b16 %v25
    %v75 = vunpack.c.l.b16 %v26
    %v76 = vunpack.c.h.b16 %v26
    %v77 = vunpack.c.l.b16 %v27
    %v78 = vunpack.c.h.b16 %v27
    %v79 = vunpack.c.l.b16 %v28
    %v80 = vunpack.c.h.b16 %v28
    %v81 = vunpack.c.l.b16 %v29
    %v82 = vunpack.c.h.b16 %v29
    %v83 = vunpack.c.l.b16 %v30
    %v84 = vunpack.c.h.b16 %v30
    %v85 = vunpack.c.l.b16 %v31
    %v86 = vunpack.c.h.b16 %v31
    %v87 = vunpack.c.l.b16 %v32
    %v88 = vunpack.c.h.b16 %v32
    %v89 = vunpack.c.l.b16 %v33
    %v90 = vunpack.c.h.b16 %v33
    %v91 = vpack.c.b16 %v61, %v59
    %v92 = vpack.c.b16 %v62, %v60
    %v93 = vpack.c.b16 %v65, %v63
    %v94 = vpack.c.b16 %v66, %v64
    %v95 = vpack.c.b16 %v69, %v67
    %v96 = vpack.c.b16 %v70, %v68
    %v97 = vpack.c.b16 %v73, %v71
    %v98 = vpack.c.b16 %v74, %v72
    %v99 = vpack.c.b16 %v77, %v75
    %v100 = vpack.c.b16 %v78, %v76
    %v101 = vpack.c.b16 %v81, %v79
    %v102 = vpack.c.b16 %v82, %v80
    %v103 = vpack.c.b16 %v85, %v83
    %v104 = vpack.c.b16 %v86, %v84
    %v105 = vpack.c.b16 %v89, %v87
    %v106 = vpack.c.b16 %v90, %v88
    %vm115 = vcmask 261120
    %v117 = vsel %vm115, %v41, 0
    %v120 = vsel %vm115, %v92, 0
    %v123 = vsel %vm115, %v94, 0
    %v126 = vsel %vm115, %v96, 0
    %v129 = vsel %vm115, %v98, 0
    %v132 = vsel %vm115, %v100, 0
    %v135 = vsel %vm115, %v102, 0
    %v138 = vsel %vm115, %v104, 0
    %v141 = vsel %vm115, %v106, 0
    %143 = vmatprep.subr.bf16.mxu0 %v120
    %144 = vmatpush1.bf16.xpose.msra.mxu0 %v91
    %145 = vmatprep.subr.bf16.mxu0 %v123
    %146 = vmatpush1.bf16.xpose.msra.mxu0 %v93
    %147 = vmatprep.subr.bf16.mxu0 %v126
    %148 = vmatpush1.bf16.xpose.msra.mxu0 %v95
    %149 = vmatprep.subr.bf16.mxu0 %v129
    %150 = vmatpush1.bf16.xpose.msra.mxu0 %v97
    %151 = vmatprep.subr.bf16.mxu0 %v132
    %152 = vmatpush1.bf16.xpose.msra.mxu0 %v99
    %153 = vmatprep.subr.bf16.mxu0 %v135
    %154 = vmatpush1.bf16.xpose.msra.mxu0 %v101
    %155 = vmatprep.subr.bf16.mxu0 %v138
    %156 = vmatpush1.bf16.xpose.msra.mxu0 %v103
    %157 = vmatprep.subr.bf16.mxu0 %v141
    %158 = vmatpush1.bf16.xpose.msra.mxu0 %v105
    %159 = vmatprep.subr.bf16.mxu0 0
    %160 = vmatpush1.bf16.xpose.msra.mxu0 0
    %161 = vmatprep.subr.bf16.mxu0 0
    %162 = vmatpush1.bf16.xpose.msra.mxu0 0
    %163 = vmatprep.subr.bf16.mxu0 0
    %164 = vmatpush1.bf16.xpose.msra.mxu0 0
    %165 = vmatprep.subr.bf16.mxu0 0
    %166 = vmatpush1.bf16.xpose.msra.mxu0 0
    %167 = vmatprep.subr.bf16.mxu0 0
    %168 = vmatpush1.bf16.xpose.msra.mxu0 0
    %169 = vmatprep.subr.bf16.mxu0 0
    %170 = vmatpush1.bf16.xpose.msra.mxu0 0
    %171 = vmatprep.subr.bf16.mxu0 0
    %172 = vmatpush1.bf16.xpose.msra.mxu0 0
    %173 = vmatprep.subr.bf16.mxu0 0
    %174 = vmatpush1.bf16.xpose.msra.mxu0 0
    %175 = vmatprep.mubr.bf16.mxu0 %v117
    %176 = vmatmul.mubr.bf16.gmra.mrb[0].mxu0 %v40
    %v177 = vpop.f32.mrb[0].mxu0
    %v178 = vadd.f32 0.0, %v177
    %v179 = vpop.f32.mrb[0].mxu0
    %v180 = vpop.f32.mrb[0].mxu0
    %v181 = vadd.f32 0.0, %v180
    %v182 = vpop.f32.mrb[0].mxu0
    %183 = vdwg.mxu0
    %v184 = vunpack.c.l.bf16 %v16
    %v185 = vunpack.c.h.bf16 %v16
    %v186 = vunpack.c.l.bf16 %v17
    %v187 = vunpack.c.h.bf16 %v17
    %v188 = vmul.f32 %v184, %v184
    %v189 = vmul.f32 %v185, %v185
    %v190 = vmul.f32 %v186, %v186
    %v191 = vmul.f32 %v187, %v187
    %v192 = vsel %vm115, %v189, 0.0
    %v193 = vadd.f32 %v188, %v192
    %194 = vadd.xlane.f32.xlu0 %v193
    %v195 = vpop.xlane.xlu0 %194
    %v196 = vsel %vm115, %v191, 0.0
    %v197 = vadd.f32 %v190, %v196
    %198 = vadd.xlane.f32.xlu0 %v197
    %v199 = vpop.xlane.xlu0 %198
    %v200 = vrsqrt.pop %v195
    %v201 = vmul.f32 %v195, %v200
    %vm202 = vcmp.eq.f32.partialorder %v195, inf
    %v203 = vsel %vm202, %v195, %v201
    %vm204 = vcmp.eq.f32.partialorder %v195, 0.0
    %v205 = vand.u32 %v195, 2147483648
    %v206 = vsel %vm204, %v205, %v203
    %v207 = vrsqrt.pop %v199
    %v208 = vmul.f32 %v199, %v207
    %vm209 = vcmp.eq.f32.partialorder %v199, inf
    %v210 = vsel %vm209, %v199, %v208
    %vm211 = vcmp.eq.f32.partialorder %v199, 0.0
    %v212 = vand.u32 %v199, 2147483648
    %v213 = vsel %vm211, %v212, %v210
    %v214 = vadd.f32 %v206, 1e-05
    %v215 = vadd.f32 %v213, 1e-05
    %v216 = vrcp.pop %v214
    %v217 = vrcp.pop %v215
    %v218 = vmul.f32 %v178, %v216
    %v219 = vmul.f32 %v181, %v217
    %v220 = vld [vmem:[%s2] sm:$0x1]
    %v222 = vlaneseq
    %v223 = vshrl.u32 %v222, 7
    %v224 = vsub.s32 0, %v223
    %v225 = vrot.slane %v220, %v224
    %v227 = vmul.f32 %v218, %v225
    %v228 = vmul.f32 %v219, %v225
    %229 = vst [vmem:[#allocation2] sm:$0xff] %v227
    %230 = vst [vmem:[#allocation2 + $0x8] sm:$0xff] %v228
    // Predicated region
    $region14: #{tpu_custom_call.1} parent=1 // pred_check
      _
    $region15: #{tpu_custom_call.1} parent=1 // pred_check_branch
      %232 = sbr.rel (0) target = $region17
    $region16: #{tpu_custom_call.1} parent=1 // pred_region
      %s234 = ssub.s32 256, 128
      %235 = vsyncadd [#allocation3], %s234
      %s236 = sshll.u32 [#allocation2], 4
      %s237 = int_to_ptr.vmem [resolvable:$true] %s236
      %242 = dma.vmem_to_hbm [thread:$0]  %s237, 128, %s3, [#allocation3], 128, 128, 8
    $region17: #{tpu_custom_call.1} parent=1 // pred_fallthru
      _
    // Predicated region
    $region18: #{tpu_custom_call.1} parent=1 // pred_check
      _
    $region19: #{tpu_custom_call.1} parent=1 // pred_check_branch
      %244 = sbr.rel (0) target = $region21
    $region20: #{tpu_custom_call.1} parent=1 // pred_region
      %245 = dma.done [#allocation3], 256
    $region21: #{tpu_custom_call.1} parent=1 // pred_fallthru
      _
    %246 = vsyncpa [#allocation3], 1

</llo_original>
